<compile_context>
chip_gen: v5e
topology: v5e:2x2
jax: 0.10.0
libtpu: 0.0.40
codegen_flags: <defaults>
</compile_context>

<pallas_src>
import jax
import jax.numpy as jnp
from jax import lax
from jax.experimental import pallas as pl
from jax.experimental.pallas import tpu as pltpu


def gnn_kernel(x_ref, w1r_ref, b1_ref, w2_ref, o_ref):
    # x_ref  : (S, N)  one batch element (leading batch dim squeezed by BlockSpec)
    # w1r    : (N, N)  = W1^T + I_N   (residual folded into the weight)
    # b1     : (1, N)  conv1 bias (broadcast over the S sublanes)
    # w2     : (S, S)  conv2 weight (bias=False)
    hp = lax.Precision.HIGHEST
    x = x_ref[...]

    # conv1 (k=1) over the node axis + bias + residual (via W1^T + I), then ReLU.
    h = jnp.dot(x, w1r_ref[...], precision=hp, preferred_element_type=jnp.float32)
    h = jnp.maximum(h + b1_ref[...], 0.0)

    # conv2 (k=1, bias=False) over the state axis.
    out = jnp.dot(w2_ref[...], h, precision=hp, preferred_element_type=jnp.float32)
    o_ref[...] = out.astype(o_ref.dtype)


def pack_gnn_params(w1, b1, w2):
    """One-time weight prep.

    w1: (N, N) = conv1.weight[:, :, 0]
    b1: (N,)   = conv1.bias
    w2: (S, S) = conv2.weight[:, :, 0]
    Returns (W1^T + I, b1 as (1, N), W2).
    """
    n = w1.shape[0]
    w1r = w1.T + jnp.eye(n, dtype=w1.dtype)   # fold the residual into the weight
    return w1r, b1.reshape(1, n), w2


@jax.jit
def gnn_forward(x, w1r, b1r, w2):
    """x: (B, S, N) in native PyTorch layout; returns (B, S, N)."""
    B, S, N = x.shape

    flops = B * (2 * S * N * N + 2 * S * S * N)
    bytes_accessed = 4 * (x.size + w1r.size + b1r.size + w2.size + B * S * N)

    return pl.pallas_call(
        gnn_kernel,
        out_shape=jax.ShapeDtypeStruct((B, S, N), x.dtype),
        grid=(B,),
        in_specs=[
            # Activations: one batch element per grid step, batch dim squeezed.
            pl.BlockSpec((None, S, N), lambda b: (b, 0, 0)),
            # Weights: constant block index -> fetched once, VMEM-resident.
            pl.BlockSpec((N, N), lambda b: (0, 0)),
            pl.BlockSpec((1, N), lambda b: (0, 0)),
            pl.BlockSpec((S, S), lambda b: (0, 0)),
        ],
        out_specs=pl.BlockSpec((None, S, N), lambda b: (b, 0, 0)),
        compiler_params=pltpu.CompilerParams(
            # Batch steps are independent -> megacore-shardable on v7x.
            dimension_semantics=("parallel",)),
        cost_estimate=pl.CostEstimate(
            flops=flops, transcendentals=0, bytes_accessed=bytes_accessed),
    )(x, w1r, b1r, w2)


def gnn_ref(x, w1, b1, w2):
    """Pure-JAX reference of the PyTorch forward."""
    hp = lax.Precision.HIGHEST
    h = jnp.einsum("bsi,oi->bso", x, w1, precision=hp) + b1[None, None, :]
    h = jnp.maximum(h + x, 0.0)
    return jnp.einsum("oc,bcn->bon", w2, h, precision=hp)


if __name__ == "__main__":
    # num_state must be 50 (conv2 hard-codes 50 input channels); num_node = 64.
    B, S, N = 2, 50, 64

    key = jax.random.PRNGKey(0)
    k1, k2, k3, k4 = jax.random.split(key, 4)
    x = jax.random.normal(k1, (B, S, N), dtype=jnp.float32)
    # Synthetic parameters (shapes match nn.Conv1d weights with k=1 squeezed).
    w1 = jax.random.normal(k2, (N, N), dtype=jnp.float32) * 0.1   # conv1.weight[:, :, 0]
    b1 = jax.random.normal(k3, (N,), dtype=jnp.float32) * 0.1     # conv1.bias
    w2 = jax.random.normal(k4, (S, S), dtype=jnp.float32) * 0.1   # conv2.weight[:, :, 0]

    packed = pack_gnn_params(w1, b1, w2)          # one-time weight prep
    out = gnn_forward(x, *packed)
    out = jax.block_until_ready(out)

    ref = gnn_ref(x, w1, b1, w2)
    assert out.shape == (B, S, N)
    assert jnp.allclose(out, ref, atol=1e-4, rtol=1e-4), "mismatch vs reference"

    print("KERNEL_OK")
</pallas_src>

<mosaic_0001>
module attributes {stable_mosaic.version = 11 : i64} {
  func.func @gnn_kernel(%arg0: i32, %arg1: memref<1x50x64xf32, #tpu.memory_space<vmem>>, %arg2: memref<64x64xf32, #tpu.memory_space<vmem>>, %arg3: memref<1x64xf32, #tpu.memory_space<vmem>>, %arg4: memref<50x50xf32, #tpu.memory_space<vmem>>, %arg5: memref<1x50x64xf32, #tpu.memory_space<vmem>>) attributes {dimension_semantics = [#tpu.dimension_semantics<parallel>], iteration_bounds = array<i64: 2>, scalar_prefetch = 0 : i64, scratch_operands = 0 : i64, tpu.core_type = #tpu.core_type<tc>, window_params = [{transform_indices = @transform_0, window_bounds = array<i64: 1, 50, 64>}, {pipeline_mode = #tpu.pipeline_mode<synchronous>, transform_indices = @transform_1, window_bounds = array<i64: 64, 64>}, {pipeline_mode = #tpu.pipeline_mode<synchronous>, transform_indices = @transform_2, window_bounds = array<i64: 1, 64>}, {pipeline_mode = #tpu.pipeline_mode<synchronous>, transform_indices = @transform_3, window_bounds = array<i64: 50, 50>}, {transform_indices = @transform_4, window_bounds = array<i64: 1, 50, 64>}]} {
    %c0 = arith.constant 0 : index
    %c0_0 = arith.constant 0 : index
    %c0_1 = arith.constant 0 : index
    %0 = vector.load %arg1[%c0, %c0_0, %c0_1] : memref<1x50x64xf32, #tpu.memory_space<vmem>>, vector<1x50x64xf32>
    %1 = vector.shape_cast %0 : vector<1x50x64xf32> to vector<50x64xf32>
    %c0_2 = arith.constant 0 : index
    %c0_3 = arith.constant 0 : index
    %2 = vector.load %arg2[%c0_2, %c0_3] : memref<64x64xf32, #tpu.memory_space<vmem>>, vector<64x64xf32>
    %cst = arith.constant dense<0.000000e+00> : vector<50x64xf32>
    %3 = tpu.matmul %1, %2, %cst {dimension_numbers = #tpu.dot_dimension_numbers<[1], [0], [0], [1], [0, 0, 1, 1], [], []>, precision = #tpu.contract_precision<fp32>} : vector<50x64xf32>, vector<64x64xf32>, vector<50x64xf32> -> vector<50x64xf32>
    %c0_4 = arith.constant 0 : index
    %c0_5 = arith.constant 0 : index
    %4 = vector.load %arg3[%c0_4, %c0_5] : memref<1x64xf32, #tpu.memory_space<vmem>>, vector<1x64xf32>
    %5 = vector.broadcast %4 : vector<1x64xf32> to vector<50x64xf32>
    %6 = arith.addf %3, %5 : vector<50x64xf32>
    %cst_6 = arith.constant 0.000000e+00 : f32
    %7 = vector.broadcast %cst_6 : f32 to vector<50x64xf32>
    %8 = arith.maximumf %6, %7 : vector<50x64xf32>
    %c0_7 = arith.constant 0 : index
    %c0_8 = arith.constant 0 : index
    %9 = vector.load %arg4[%c0_7, %c0_8] : memref<50x50xf32, #tpu.memory_space<vmem>>, vector<50x50xf32>
    %cst_9 = arith.constant dense<0.000000e+00> : vector<50x64xf32>
    %10 = tpu.matmul %9, %8, %cst_9 {dimension_numbers = #tpu.dot_dimension_numbers<[1], [0], [0], [1], [0, 0, 1, 1], [], []>, precision = #tpu.contract_precision<fp32>} : vector<50x50xf32>, vector<50x64xf32>, vector<50x64xf32> -> vector<50x64xf32>
    %c0_10 = arith.constant 0 : index
    %c0_11 = arith.constant 0 : index
    %c0_12 = arith.constant 0 : index
    %11 = vector.load %arg5[%c0_10, %c0_11, %c0_12] : memref<1x50x64xf32, #tpu.memory_space<vmem>>, vector<1x50x64xf32>
    %12 = vector.shape_cast %11 : vector<1x50x64xf32> to vector<50x64xf32>
    %13 = vector.shape_cast %10 : vector<50x64xf32> to vector<1x50x64xf32>
    tpu.vector_store %arg5[%c0_10, %c0_11, %c0_12], %13 {strides = array<i32>} : memref<1x50x64xf32, #tpu.memory_space<vmem>>, vector<1x50x64xf32>,
    return
  }
  func.func @transform_0(%arg0: i32) -> (i32, i32, i32) {
    %c0_i32 = arith.constant 0 : i32
    %c0_i32_0 = arith.constant 0 : i32
    %c0_i32_1 = arith.constant 0 : i32
    return %arg0, %c0_i32, %c0_i32_0 : i32, i32, i32
  }
  func.func @transform_1(%arg0: i32) -> (i32, i32) {
    %c0_i32 = arith.constant 0 : i32
    %c0_i32_0 = arith.constant 0 : i32
    %c0_i32_1 = arith.constant 0 : i32
    return %c0_i32, %c0_i32_0 : i32, i32
  }
  func.func @transform_2(%arg0: i32) -> (i32, i32) {
    %c0_i32 = arith.constant 0 : i32
    %c0_i32_0 = arith.constant 0 : i32
    %c0_i32_1 = arith.constant 0 : i32
    return %c0_i32, %c0_i32_0 : i32, i32
  }
  func.func @transform_3(%arg0: i32) -> (i32, i32) {
    %c0_i32 = arith.constant 0 : i32
    %c0_i32_0 = arith.constant 0 : i32
    %c0_i32_1 = arith.constant 0 : i32
    return %c0_i32, %c0_i32_0 : i32, i32
  }
  func.func @transform_4(%arg0: i32) -> (i32, i32, i32) {
    %c0_i32 = arith.constant 0 : i32
    %c0_i32_0 = arith.constant 0 : i32
    %c0_i32_1 = arith.constant 0 : i32
    return %arg0, %c0_i32, %c0_i32_0 : i32, i32, i32
  }
}

</mosaic_0001>

<llo_original>
// kernel: gnn_forward.1
$region0: #{gnn_forward.1}
  #allocation0 [shape = 'u32[]', space=smem, size = 0x4, offset = 0x4, fixed_abs, tag = 'smem constant byte address 0x4 - core index']
  #allocation1 [shape = 'u32[72,128]{1,0:T(1,128)}', space=vmem, size = 0x9000, scoped, tag = 'internal scratch']
  %s0 = inlined_call_operand.vmem [shape: f32[2,50,64], index: 0, kind: input, shape index: {}]
  %s1 = inlined_call_operand.vmem [shape: f32[64,64], index: 1, kind: input, shape index: {}]
  %s2 = inlined_call_operand.vmem [shape: f32[1,64], index: 2, kind: input, shape index: {}]
  %s3 = inlined_call_operand.vmem [shape: f32[50,50], index: 3, kind: input, shape index: {}]
  %s4 = inlined_call_operand.vmem [shape: f32[2,50,64], index: 4, kind: output, shape index: {}]
  %s5 = sld [smem:[#allocation0]]
  $region49: #{gnn_forward.1} parent=0
    _
  %s7 = ssub.s32 1, %s5
  %s8 = scalar_select 0, %s7, %s5
  loop: start=0, step=1, limit=4
  $region2: #{gnn_forward.1} parent=0 // loop_pre_header
    _
  $region3: #{gnn_forward.1} parent=0 // loop_header
    %s10 = sphi 0, %s14
    %p11 = scmp.ge.s32.totalorder %s10, 4
    %s20 = sphi 0, %s22
    %s23 = sphi 0, %s20
    %s24 = sphi 0, %s23
    %s40 = sphi 0, %s24
    %s44 = sphi 0, %s44
    %s46 = sphi 0, %s44
    %s47 = sphi 0, %s46
    %s61 = sphi 0, %s47
    %s65 = sphi 0, %s65
    %s67 = sphi 0, %s65
    %s68 = sphi 0, %s67
    %s82 = sphi 0, %s68
    %s86 = sphi 0, %s86
    %s88 = sphi 0, %s86
    %s89 = sphi 0, %s88
    %s103 = sphi 0, %s89
    %s109 = sphi 0, %s111
    %s112 = sphi 0, %s109
    %s113 = sphi 0, %s112
    %s129 = sphi 0, %s113
  $region4: #{gnn_forward.1} parent=0 // loop_header_branch
    %13 = sbr.rel (%p11) target = $region8
  $region5: #{gnn_forward.1} parent=0 // loop_body
    %s15 = ssub.s32 %s10, 1
    %s16 = ssub.s32 %s10, 2
    %s17 = sadd.s32 %s10, 1
    %s18 = ssub.s32 %s10, %s17
    %p19 = scmp.eq.s32.totalorder %s18, 0
    %s21 = sadd.s32 %s20, 1
    %s22 = scalar_select %p19, %s20, %s21
    %p25 = pneg %p19
    %p26 = scmp.eq.s32.totalorder %s10, 1
    %p27 = por %p25, %p26
    %p28 = scmp.ne.s32.totalorder %s20, %s23
    %p29 = scmp.eq.s32.totalorder %s10, 0
    %p30 = por %p28, %p29
    %p31 = scmp.ne.s32.totalorder %s20, %s23
    %p32 = scmp.eq.s32.totalorder %s15, 1
    %p33 = por %p31, %p32
    %p34 = scmp.ne.s32.totalorder %s23, %s24
    %p35 = scmp.eq.s32.totalorder %s15, 0
    %p36 = por %p34, %p35
    %p37 = scmp.ne.s32.totalorder %s23, %s24
    %p38 = scmp.eq.s32.totalorder %s16, 1
    %p39 = por %p37, %p38
    %p41 = scmp.ne.s32.totalorder %s24, %s40
    %p42 = scmp.eq.s32.totalorder %s16, 0
    %p43 = por %p41, %p42
    %s45 = sadd.s32 %s44, 1
    %p48 = scmp.eq.s32.totalorder %s10, 1
    %p49 = scmp.ne.s32.totalorder %s44, %s46
    %p50 = scmp.eq.s32.totalorder %s10, 0
    %p51 = por %p49, %p50
    %p52 = scmp.ne.s32.totalorder %s44, %s46
    %p53 = scmp.eq.s32.totalorder %s15, 1
    %p54 = por %p52, %p53
    %p55 = scmp.ne.s32.totalorder %s46, %s47
    %p56 = scmp.eq.s32.totalorder %s15, 0
    %p57 = por %p55, %p56
    %p58 = scmp.ne.s32.totalorder %s46, %s47
    %p59 = scmp.eq.s32.totalorder %s16, 1
    %p60 = por %p58, %p59
    %p62 = scmp.ne.s32.totalorder %s47, %s61
    %p63 = scmp.eq.s32.totalorder %s16, 0
    %p64 = por %p62, %p63
    %s66 = sadd.s32 %s65, 1
    %p69 = scmp.eq.s32.totalorder %s10, 1
    %p70 = scmp.ne.s32.totalorder %s65, %s67
    %p71 = scmp.eq.s32.totalorder %s10, 0
    %p72 = por %p70, %p71
    %p73 = scmp.ne.s32.totalorder %s65, %s67
    %p74 = scmp.eq.s32.totalorder %s15, 1
    %p75 = por %p73, %p74
    %p76 = scmp.ne.s32.totalorder %s67, %s68
    %p77 = scmp.eq.s32.totalorder %s15, 0
    %p78 = por %p76, %p77
    %p79 = scmp.ne.s32.totalorder %s67, %s68
    %p80 = scmp.eq.s32.totalorder %s16, 1
    %p81 = por %p79, %p80
    %p83 = scmp.ne.s32.totalorder %s68, %s82
    %p84 = scmp.eq.s32.totalorder %s16, 0
    %p85 = por %p83, %p84
    %s87 = sadd.s32 %s86, 1
    %p90 = scmp.eq.s32.totalorder %s10, 1
    %p91 = scmp.ne.s32.totalorder %s86, %s88
    %p92 = scmp.eq.s32.totalorder %s10, 0
    %p93 = por %p91, %p92
    %p94 = scmp.ne.s32.totalorder %s86, %s88
    %p95 = scmp.eq.s32.totalorder %s15, 1
    %p96 = por %p94, %p95
    %p97 = scmp.ne.s32.totalorder %s88, %s89
    %p98 = scmp.eq.s32.totalorder %s15, 0
    %p99 = por %p97, %p98
    %p100 = scmp.ne.s32.totalorder %s88, %s89
    %p101 = scmp.eq.s32.totalorder %s16, 1
    %p102 = por %p100, %p101
    %p104 = scmp.ne.s32.totalorder %s89, %s103
    %p105 = scmp.eq.s32.totalorder %s16, 0
    %p106 = por %p104, %p105
    %s107 = ssub.s32 %s10, %s17
    %p108 = scmp.eq.s32.totalorder %s107, 0
    %s110 = sadd.s32 %s109, 1
    %s111 = scalar_select %p108, %s109, %s110
    %p114 = pneg %p108
    %p115 = scmp.eq.s32.totalorder %s10, 1
    %p116 = por %p114, %p115
    %p117 = scmp.ne.s32.totalorder %s109, %s112
    %p118 = scmp.eq.s32.totalorder %s10, 0
    %p119 = por %p117, %p118
    %p120 = scmp.ne.s32.totalorder %s109, %s112
    %p121 = scmp.eq.s32.totalorder %s15, 1
    %p122 = por %p120, %p121
    %p123 = scmp.ne.s32.totalorder %s112, %s113
    %p124 = scmp.eq.s32.totalorder %s15, 0
    %p125 = por %p123, %p124
    %p126 = scmp.ne.s32.totalorder %s112, %s113
    %p127 = scmp.eq.s32.totalorder %s16, 1
    %p128 = por %p126, %p127
    %p130 = scmp.ne.s32.totalorder %s113, %s129
    %p131 = scmp.eq.s32.totalorder %s16, 0
    %p132 = por %p130, %p131
    %p133 = scmp.le.s32.totalorder 1, %s10
    %p134 = scmp.lt.s32.totalorder %s10, 3
    %p135 = pnand %p133, %p134
    %p136 = pneg %p135
    // Predicated region
    $region9: #{gnn_forward.1} parent=5 // pred_check
      _
    $region10: #{gnn_forward.1} parent=5 // pred_check_branch
      %138 = sbr.rel (%p135) target = $region12
    $region11: #{gnn_forward.1} parent=5 // pred_region
      %s139 = ssub.s32 %s10, 1
      // Predicated region
      $region13: #{gnn_forward.1} parent=11 // pred_check
        %p140 = pneg %p57
      $region14: #{gnn_forward.1} parent=11 // pred_check_branch
        %142 = sbr.rel (%p140) target = $region16
      $region15: #{gnn_forward.1} parent=11 // pred_region
        _
      $region16: #{gnn_forward.1} parent=11 // pred_fallthru
        _
      // Predicated region
      $region17: #{gnn_forward.1} parent=11 // pred_check
        %p143 = pneg %p78
      $region18: #{gnn_forward.1} parent=11 // pred_check_branch
        %145 = sbr.rel (%p143) target = $region20
      $region19: #{gnn_forward.1} parent=11 // pred_region
        _
      $region20: #{gnn_forward.1} parent=11 // pred_fallthru
        _
      // Predicated region
      $region21: #{gnn_forward.1} parent=11 // pred_check
        %p146 = pneg %p99
      $region22: #{gnn_forward.1} parent=11 // pred_check_branch
        %148 = sbr.rel (%p146) target = $region24
      $region23: #{gnn_forward.1} parent=11 // pred_region
        _
      $region24: #{gnn_forward.1} parent=11 // pred_fallthru
        _
    $region12: #{gnn_forward.1} parent=5 // pred_fallthru
      _
    %p149 = scmp.lt.s32.totalorder %s10, 2
    // Predicated region
    $region25: #{gnn_forward.1} parent=5 // pred_check
      %p150 = pneg %p149
    $region26: #{gnn_forward.1} parent=5 // pred_check_branch
      %152 = sbr.rel (%p150) target = $region28
    $region27: #{gnn_forward.1} parent=5 // pred_region
      // Predicated region
      $region29: #{gnn_forward.1} parent=27 // pred_check
        %p153 = pneg %p30
      $region30: #{gnn_forward.1} parent=27 // pred_check_branch
        %155 = sbr.rel (%p153) target = $region32
      $region31: #{gnn_forward.1} parent=27 // pred_region
        %p156 = scmp.lt.s32.totalorder %s10, 1
        %s157 = scalar_select %p156, %s10, 1
        %s158 = smul.addr %s157, 7
        %s159 = smul.addr %s158, 8
        %s160 = scalar_lea.vmem %s0, %s159
      $region32: #{gnn_forward.1} parent=27 // pred_fallthru
        _
    $region28: #{gnn_forward.1} parent=5 // pred_fallthru
      _
    %p161 = scmp.le.s32.totalorder 1, %s10
    %p162 = scmp.lt.s32.totalorder %s10, 3
    %p163 = pnand %p161, %p162
    %p164 = pneg %p163
    // Predicated region
    $region33: #{gnn_forward.1} parent=5 // pred_check
      _
    $region34: #{gnn_forward.1} parent=5 // pred_check_branch
      %166 = sbr.rel (%p163) target = $region36
    $region35: #{gnn_forward.1} parent=5 // pred_region
      %s167 = ssub.s32 %s10, 1
      %p168 = scmp.lt.s32.totalorder %s15, 1
      %s169 = scalar_select %p168, %s15, 1
      %s170 = smul.addr %s169, 7
      %s171 = smul.addr %s170, 8
      %s172 = scalar_lea.vmem %s0, %s171
      %p173 = pneg %p36
      %p174 = pneg %p33
      %p175 = pneg %p57
      %p176 = pneg %p54
      %p177 = pneg %p78
      %p178 = pneg %p75
      %p179 = pneg %p99
      %p180 = pneg %p96
      %p181 = pneg %p125
      %p182 = pneg %p122
      %p183 = scmp.lt.s32.totalorder %s15, 1
      %s184 = scalar_select %p183, %s15, 1
      %s185 = smul.addr %s184, 7
      %s186 = smul.addr %s185, 8
      %s187 = scalar_lea.vmem %s4, %s186
      %p188 = scmp.lt.s32.totalorder %s15, 1
      %s189 = scalar_select %p188, %s15, 1
      %s190 = smul.addr %s189, 7
      %s191 = smul.addr %s190, 8
      %s192 = scalar_lea.vmem %s0, %s191
      %p193 = scmp.lt.s32.totalorder %s15, 1
      %s194 = scalar_select %p193, %s15, 1
      %s195 = smul.addr %s194, 7
      %s196 = smul.addr %s195, 8
      %s197 = scalar_lea.vmem %s4, %s196
      %v198 = vld [vmem:[%s192] sm:$0xff]
      %v199 = vld [vmem:[%s192 + $0x8] sm:$0xff]
      %v200 = vld [vmem:[%s192 + $0x10] sm:$0xff]
      %v201 = vld [vmem:[%s192 + $0x18] sm:$0xff]
      %v202 = vld [vmem:[%s192 + $0x20] sm:$0xff]
      %v203 = vld [vmem:[%s192 + $0x28] sm:$0xff]
      %v204 = vld [vmem:[%s192 + $0x30] sm:$0x3]
      %v205 = vld [vmem:[%s1] sm:$0xff]
      %v206 = vld [vmem:[%s1 + $0x8] sm:$0xff]
      %v207 = vld [vmem:[%s1 + $0x10] sm:$0xff]
      %v208 = vld [vmem:[%s1 + $0x18] sm:$0xff]
      %v209 = vld [vmem:[%s1 + $0x20] sm:$0xff]
      %v210 = vld [vmem:[%s1 + $0x28] sm:$0xff]
      %v211 = vld [vmem:[%s1 + $0x30] sm:$0xff]
      %v212 = vld [vmem:[%s1 + $0x38] sm:$0xff]
      %v213 = vld [vmem:[%s2] sm:$0x1]
      %v215 = vperm.slane %v213, 0
      %vm217 = vcmask 523264
      %v219 = vsel %vm217, %v198, 0
      %v222 = vsel %vm217, %v199, 0
      %v225 = vsel %vm217, %v200, 0
      %v228 = vsel %vm217, %v201, 0
      %v231 = vsel %vm217, %v202, 0
      %v234 = vsel %vm217, %v203, 0
      %v237 = vsel %vm217, %v204, 0
      %239 = vmatpush.msra.mxu0 0.0
      %240 = vmatpush.msra.mxu0 0.0
      %241 = vmatpush.msra.mxu0 0.0
      %242 = vmatpush.msra.mxu0 0.0
      %243 = vmatpush.msra.mxu0 0.0
      %244 = vmatpush.msra.mxu0 0.0
      %245 = vmatpush.msra.mxu0 0.0
      %246 = vmatpush.msra.mxu0 0.0
      %v247 = vand.u32 %v212, 4294901760
      %248 = vmatpush.msra.mxu0 %v247
      %v249 = vand.u32 %v211, 4294901760
      %250 = vmatpush.msra.mxu0 %v249
      %v251 = vand.u32 %v210, 4294901760
      %252 = vmatpush.msra.mxu0 %v251
      %v253 = vand.u32 %v209, 4294901760
      %254 = vmatpush.msra.mxu0 %v253
      %v255 = vand.u32 %v208, 4294901760
      %256 = vmatpush.msra.mxu0 %v255
      %v257 = vand.u32 %v207, 4294901760
      %258 = vmatpush.msra.mxu0 %v257
      %v259 = vand.u32 %v206, 4294901760
      %260 = vmatpush.msra.mxu0 %v259
      %v261 = vand.u32 %v205, 4294901760
      %262 = vmatpush.msra.mxu0 %v261
      %v263 = vand.u32 %v219, 4294901760
      %v264 = vsub.f32 %v219, %v263
      %v265 = vand.u32 %v264, 4294901760
      %v266 = vsub.f32 %v264, %v265
      %v267 = vand.u32 %v266, 4294901760
      %268 = vmatmul.f32.gmra.mxu0 %v267
      %v269 = vpop.f32.mrf.mxu0
      %v270 = vadd.f32 %v215, %v269
      %v271 = vand.u32 %v222, 4294901760
      %v272 = vsub.f32 %v222, %v271
      %v273 = vand.u32 %v272, 4294901760
      %v274 = vsub.f32 %v272, %v273
      %v275 = vand.u32 %v274, 4294901760
      %276 = vmatmul.f32.gmra.mxu0 %v275
      %v277 = vpop.f32.mrf.mxu0
      %v278 = vadd.f32 %v215, %v277
      %v279 = vand.u32 %v225, 4294901760
      %v280 = vsub.f32 %v225, %v279
      %v281 = vand.u32 %v280, 4294901760
      %v282 = vsub.f32 %v280, %v281
      %v283 = vand.u32 %v282, 4294901760
      %284 = vmatmul.f32.gmra.mxu0 %v283
      %v285 = vpop.f32.mrf.mxu0
      %v286 = vadd.f32 %v215, %v285
      %v287 = vand.u32 %v228, 4294901760
      %v288 = vsub.f32 %v228, %v287
      %v289 = vand.u32 %v288, 4294901760
      %v290 = vsub.f32 %v288, %v289
      %v291 = vand.u32 %v290, 4294901760
      %292 = vmatmul.f32.gmra.mxu0 %v291
      %v293 = vpop.f32.mrf.mxu0
      %v294 = vadd.f32 %v215, %v293
      %v295 = vand.u32 %v231, 4294901760
      %v296 = vsub.f32 %v231, %v295
      %v297 = vand.u32 %v296, 4294901760
      %v298 = vsub.f32 %v296, %v297
      %v299 = vand.u32 %v298, 4294901760
      %300 = vmatmul.f32.gmra.mxu0 %v299
      %v301 = vpop.f32.mrf.mxu0
      %v302 = vadd.f32 %v215, %v301
      %v303 = vand.u32 %v234, 4294901760
      %v304 = vsub.f32 %v234, %v303
      %v305 = vand.u32 %v304, 4294901760
      %v306 = vsub.f32 %v304, %v305
      %v307 = vand.u32 %v306, 4294901760
      %308 = vmatmul.f32.gmra.mxu0 %v307
      %v309 = vpop.f32.mrf.mxu0
      %v310 = vadd.f32 %v215, %v309
      %v311 = vand.u32 %v237, 4294901760
      %v312 = vsub.f32 %v237, %v311
      %v313 = vand.u32 %v312, 4294901760
      %v314 = vsub.f32 %v312, %v313
      %v315 = vand.u32 %v314, 4294901760
      %316 = vmatmul.f32.gmra.mxu0 %v315
      %v317 = vpop.f32.mrf.mxu0
      %v318 = vadd.f32 %v215, %v317
      %319 = vdwg.mxu0
      %320 = vmatpush.msra.mxu0 0.0
      %321 = vmatpush.msra.mxu0 0.0
      %322 = vmatpush.msra.mxu0 0.0
      %323 = vmatpush.msra.mxu0 0.0
      %324 = vmatpush.msra.mxu0 0.0
      %325 = vmatpush.msra.mxu0 0.0
      %326 = vmatpush.msra.mxu0 0.0
      %327 = vmatpush.msra.mxu0 0.0
      %v328 = vand.u32 %v212, 4294901760
      %v329 = vsub.f32 %v212, %v328
      %v330 = vand.u32 %v329, 4294901760
      %v331 = vsub.f32 %v329, %v330
      %v332 = vand.u32 %v331, 4294901760
      %333 = vmatpush.msra.mxu0 %v332
      %v334 = vand.u32 %v211, 4294901760
      %v335 = vsub.f32 %v211, %v334
      %v336 = vand.u32 %v335, 4294901760
      %v337 = vsub.f32 %v335, %v336
      %v338 = vand.u32 %v337, 4294901760
      %339 = vmatpush.msra.mxu0 %v338
      %v340 = vand.u32 %v210, 4294901760
      %v341 = vsub.f32 %v210, %v340
      %v342 = vand.u32 %v341, 4294901760
      %v343 = vsub.f32 %v341, %v342
      %v344 = vand.u32 %v343, 4294901760
      %345 = vmatpush.msra.mxu0 %v344
      %v346 = vand.u32 %v209, 4294901760
      %v347 = vsub.f32 %v209, %v346
      %v348 = vand.u32 %v347, 4294901760
      %v349 = vsub.f32 %v347, %v348
      %v350 = vand.u32 %v349, 4294901760
      %351 = vmatpush.msra.mxu0 %v350
      %v352 = vand.u32 %v208, 4294901760
      %v353 = vsub.f32 %v208, %v352
      %v354 = vand.u32 %v353, 4294901760
      %v355 = vsub.f32 %v353, %v354
      %v356 = vand.u32 %v355, 4294901760
      %357 = vmatpush.msra.mxu0 %v356
      %v358 = vand.u32 %v207, 4294901760
      %v359 = vsub.f32 %v207, %v358
      %v360 = vand.u32 %v359, 4294901760
      %v361 = vsub.f32 %v359, %v360
      %v362 = vand.u32 %v361, 4294901760
      %363 = vmatpush.msra.mxu0 %v362
      %v364 = vand.u32 %v206, 4294901760
      %v365 = vsub.f32 %v206, %v364
      %v366 = vand.u32 %v365, 4294901760
      %v367 = vsub.f32 %v365, %v366
      %v368 = vand.u32 %v367, 4294901760
      %369 = vmatpush.msra.mxu0 %v368
      %v370 = vand.u32 %v205, 4294901760
      %v371 = vsub.f32 %v205, %v370
      %v372 = vand.u32 %v371, 4294901760
      %v373 = vsub.f32 %v371, %v372
      %v374 = vand.u32 %v373, 4294901760
      %375 = vmatpush.msra.mxu0 %v374
      %v376 = vand.u32 %v219, 4294901760
      %377 = vmatmul.f32.gmra.mxu0 %v376
      %v378 = vpop.f32.mrf.mxu0
      %v379 = vadd.f32 %v270, %v378
      %v380 = vand.u32 %v222, 4294901760
      %381 = vmatmul.f32.gmra.mxu0 %v380
      %v382 = vpop.f32.mrf.mxu0
      %v383 = vadd.f32 %v278, %v382
      %v384 = vand.u32 %v225, 4294901760
      %385 = vmatmul.f32.gmra.mxu0 %v384
      %v386 = vpop.f32.mrf.mxu0
      %v387 = vadd.f32 %v286, %v386
      %v388 = vand.u32 %v228, 4294901760
      %389 = vmatmul.f32.gmra.mxu0 %v388
      %v390 = vpop.f32.mrf.mxu0
      %v391 = vadd.f32 %v294, %v390
      %v392 = vand.u32 %v231, 4294901760
      %393 = vmatmul.f32.gmra.mxu0 %v392
      %v394 = vpop.f32.mrf.mxu0
      %v395 = vadd.f32 %v302, %v394
      %v396 = vand.u32 %v234, 4294901760
      %397 = vmatmul.f32.gmra.mxu0 %v396
      %v398 = vpop.f32.mrf.mxu0
      %v399 = vadd.f32 %v310, %v398
      %v400 = vand.u32 %v237, 4294901760
      %401 = vmatmul.f32.gmra.mxu0 %v400
      %v402 = vpop.f32.mrf.mxu0
      %v403 = vadd.f32 %v318, %v402
      %404 = vdwg.mxu0
      %405 = vmatpush.msra.mxu0 0.0
      %406 = vmatpush.msra.mxu0 0.0
      %407 = vmatpush.msra.mxu0 0.0
      %408 = vmatpush.msra.mxu0 0.0
      %409 = vmatpush.msra.mxu0 0.0
      %410 = vmatpush.msra.mxu0 0.0
      %411 = vmatpush.msra.mxu0 0.0
      %412 = vmatpush.msra.mxu0 0.0
      %v413 = vand.u32 %v212, 4294901760
      %v414 = vsub.f32 %v212, %v413
      %415 = vmatpush.msra.mxu0 %v414
      %v416 = vand.u32 %v211, 4294901760
      %v417 = vsub.f32 %v211, %v416
      %418 = vmatpush.msra.mxu0 %v417
      %v419 = vand.u32 %v210, 4294901760
      %v420 = vsub.f32 %v210, %v419
      %421 = vmatpush.msra.mxu0 %v420
      %v422 = vand.u32 %v209, 4294901760
      %v423 = vsub.f32 %v209, %v422
      %424 = vmatpush.msra.mxu0 %v423
      %v425 = vand.u32 %v208, 4294901760
      %v426 = vsub.f32 %v208, %v425
      %427 = vmatpush.msra.mxu0 %v426
      %v428 = vand.u32 %v207, 4294901760
      %v429 = vsub.f32 %v207, %v428
      %430 = vmatpush.msra.mxu0 %v429
      %v431 = vand.u32 %v206, 4294901760
      %v432 = vsub.f32 %v206, %v431
      %433 = vmatpush.msra.mxu0 %v432
      %v434 = vand.u32 %v205, 4294901760
      %v435 = vsub.f32 %v205, %v434
      %436 = vmatpush.msra.mxu0 %v435
      %v437 = vand.u32 %v219, 4294901760
      %v438 = vsub.f32 %v219, %v437
      %439 = vmatmul.f32.gmra.mxu0 %v438
      %v440 = vpop.f32.mrf.mxu0
      %v441 = vadd.f32 %v379, %v440
      %v442 = vand.u32 %v222, 4294901760
      %v443 = vsub.f32 %v222, %v442
      %444 = vmatmul.f32.gmra.mxu0 %v443
      %v445 = vpop.f32.mrf.mxu0
      %v446 = vadd.f32 %v383, %v445
      %v447 = vand.u32 %v225, 4294901760
      %v448 = vsub.f32 %v225, %v447
      %449 = vmatmul.f32.gmra.mxu0 %v448
      %v450 = vpop.f32.mrf.mxu0
      %v451 = vadd.f32 %v387, %v450
      %v452 = vand.u32 %v228, 4294901760
      %v453 = vsub.f32 %v228, %v452
      %454 = vmatmul.f32.gmra.mxu0 %v453
      %v455 = vpop.f32.mrf.mxu0
      %v456 = vadd.f32 %v391, %v455
      %v457 = vand.u32 %v231, 4294901760
      %v458 = vsub.f32 %v231, %v457
      %459 = vmatmul.f32.gmra.mxu0 %v458
      %v460 = vpop.f32.mrf.mxu0
      %v461 = vadd.f32 %v395, %v460
      %v462 = vand.u32 %v234, 4294901760
      %v463 = vsub.f32 %v234, %v462
      %464 = vmatmul.f32.gmra.mxu0 %v463
      %v465 = vpop.f32.mrf.mxu0
      %v466 = vadd.f32 %v399, %v465
      %v467 = vand.u32 %v237, 4294901760
      %v468 = vsub.f32 %v237, %v467
      %469 = vmatmul.f32.gmra.mxu0 %v468
      %v470 = vpop.f32.mrf.mxu0
      %v471 = vadd.f32 %v403, %v470
      %472 = vdwg.mxu0
      %473 = vmatpush.msra.mxu0 0.0
      %474 = vmatpush.msra.mxu0 0.0
      %475 = vmatpush.msra.mxu0 0.0
      %476 = vmatpush.msra.mxu0 0.0
      %477 = vmatpush.msra.mxu0 0.0
      %478 = vmatpush.msra.mxu0 0.0
      %479 = vmatpush.msra.mxu0 0.0
      %480 = vmatpush.msra.mxu0 0.0
      %v481 = vand.u32 %v212, 4294901760
      %482 = vmatpush.msra.mxu0 %v481
      %v483 = vand.u32 %v211, 4294901760
      %484 = vmatpush.msra.mxu0 %v483
      %v485 = vand.u32 %v210, 4294901760
      %486 = vmatpush.msra.mxu0 %v485
      %v487 = vand.u32 %v209, 4294901760
      %488 = vmatpush.msra.mxu0 %v487
      %v489 = vand.u32 %v208, 4294901760
      %490 = vmatpush.msra.mxu0 %v489
      %v491 = vand.u32 %v207, 4294901760
      %492 = vmatpush.msra.mxu0 %v491
      %v493 = vand.u32 %v206, 4294901760
      %494 = vmatpush.msra.mxu0 %v493
      %v495 = vand.u32 %v205, 4294901760
      %496 = vmatpush.msra.mxu0 %v495
      %v497 = vand.u32 %v219, 4294901760
      %v498 = vsub.f32 %v219, %v497
      %v499 = vand.u32 %v498, 4294901760
      %500 = vmatmul.f32.gmra.mxu0 %v499
      %v501 = vpop.f32.mrf.mxu0
      %v502 = vadd.f32 %v441, %v501
      %v503 = vand.u32 %v222, 4294901760
      %v504 = vsub.f32 %v222, %v503
      %v505 = vand.u32 %v504, 4294901760
      %506 = vmatmul.f32.gmra.mxu0 %v505
      %v507 = vpop.f32.mrf.mxu0
      %v508 = vadd.f32 %v446, %v507
      %v509 = vand.u32 %v225, 4294901760
      %v510 = vsub.f32 %v225, %v509
      %v511 = vand.u32 %v510, 4294901760
      %512 = vmatmul.f32.gmra.mxu0 %v511
      %v513 = vpop.f32.mrf.mxu0
      %v514 = vadd.f32 %v451, %v513
      %v515 = vand.u32 %v228, 4294901760
      %v516 = vsub.f32 %v228, %v515
      %v517 = vand.u32 %v516, 4294901760
      %518 = vmatmul.f32.gmra.mxu0 %v517
      %v519 = vpop.f32.mrf.mxu0
      %v520 = vadd.f32 %v456, %v519
      %v521 = vand.u32 %v231, 4294901760
      %v522 = vsub.f32 %v231, %v521
      %v523 = vand.u32 %v522, 4294901760
      %524 = vmatmul.f32.gmra.mxu0 %v523
      %v525 = vpop.f32.mrf.mxu0
      %v526 = vadd.f32 %v461, %v525
      %v527 = vand.u32 %v234, 4294901760
      %v528 = vsub.f32 %v234, %v527
      %v529 = vand.u32 %v528, 4294901760
      %530 = vmatmul.f32.gmra.mxu0 %v529
      %v531 = vpop.f32.mrf.mxu0
      %v532 = vadd.f32 %v466, %v531
      %v533 = vand.u32 %v237, 4294901760
      %v534 = vsub.f32 %v237, %v533
      %v535 = vand.u32 %v534, 4294901760
      %536 = vmatmul.f32.gmra.mxu0 %v535
      %v537 = vpop.f32.mrf.mxu0
      %v538 = vadd.f32 %v471, %v537
      %539 = vdwg.mxu0
      %540 = vmatpush.msra.mxu0 0.0
      %541 = vmatpush.msra.mxu0 0.0
      %542 = vmatpush.msra.mxu0 0.0
      %543 = vmatpush.msra.mxu0 0.0
      %544 = vmatpush.msra.mxu0 0.0
      %545 = vmatpush.msra.mxu0 0.0
      %546 = vmatpush.msra.mxu0 0.0
      %547 = vmatpush.msra.mxu0 0.0
      %v548 = vand.u32 %v212, 4294901760
      %v549 = vsub.f32 %v212, %v548
      %v550 = vand.u32 %v549, 4294901760
      %551 = vmatpush.msra.mxu0 %v550
      %v552 = vand.u32 %v211, 4294901760
      %v553 = vsub.f32 %v211, %v552
      %v554 = vand.u32 %v553, 4294901760
      %555 = vmatpush.msra.mxu0 %v554
      %v556 = vand.u32 %v210, 4294901760
      %v557 = vsub.f32 %v210, %v556
      %v558 = vand.u32 %v557, 4294901760
      %559 = vmatpush.msra.mxu0 %v558
      %v560 = vand.u32 %v209, 4294901760
      %v561 = vsub.f32 %v209, %v560
      %v562 = vand.u32 %v561, 4294901760
      %563 = vmatpush.msra.mxu0 %v562
      %v564 = vand.u32 %v208, 4294901760
      %v565 = vsub.f32 %v208, %v564
      %v566 = vand.u32 %v565, 4294901760
      %567 = vmatpush.msra.mxu0 %v566
      %v568 = vand.u32 %v207, 4294901760
      %v569 = vsub.f32 %v207, %v568
      %v570 = vand.u32 %v569, 4294901760
      %571 = vmatpush.msra.mxu0 %v570
      %v572 = vand.u32 %v206, 4294901760
      %v573 = vsub.f32 %v206, %v572
      %v574 = vand.u32 %v573, 4294901760
      %575 = vmatpush.msra.mxu0 %v574
      %v576 = vand.u32 %v205, 4294901760
      %v577 = vsub.f32 %v205, %v576
      %v578 = vand.u32 %v577, 4294901760
      %579 = vmatpush.msra.mxu0 %v578
      %v580 = vand.u32 %v219, 4294901760
      %581 = vmatmul.f32.gmra.mxu0 %v580
      %v582 = vpop.f32.mrf.mxu0
      %v583 = vadd.f32 %v502, %v582
      %v584 = vand.u32 %v222, 4294901760
      %585 = vmatmul.f32.gmra.mxu0 %v584
      %v586 = vpop.f32.mrf.mxu0
      %v587 = vadd.f32 %v508, %v586
      %v588 = vand.u32 %v225, 4294901760
      %589 = vmatmul.f32.gmra.mxu0 %v588
      %v590 = vpop.f32.mrf.mxu0
      %v591 = vadd.f32 %v514, %v590
      %v592 = vand.u32 %v228, 4294901760
      %593 = vmatmul.f32.gmra.mxu0 %v592
      %v594 = vpop.f32.mrf.mxu0
      %v595 = vadd.f32 %v520, %v594
      %v596 = vand.u32 %v231, 4294901760
      %597 = vmatmul.f32.gmra.mxu0 %v596
      %v598 = vpop.f32.mrf.mxu0
      %v599 = vadd.f32 %v526, %v598
      %v600 = vand.u32 %v234, 4294901760
      %601 = vmatmul.f32.gmra.mxu0 %v600
      %v602 = vpop.f32.mrf.mxu0
      %v603 = vadd.f32 %v532, %v602
      %v604 = vand.u32 %v237, 4294901760
      %605 = vmatmul.f32.gmra.mxu0 %v604
      %v606 = vpop.f32.mrf.mxu0
      %v607 = vadd.f32 %v538, %v606
      %608 = vdwg.mxu0
      %609 = vmatpush.msra.mxu0 0.0
      %610 = vmatpush.msra.mxu0 0.0
      %611 = vmatpush.msra.mxu0 0.0
      %612 = vmatpush.msra.mxu0 0.0
      %613 = vmatpush.msra.mxu0 0.0
      %614 = vmatpush.msra.mxu0 0.0
      %615 = vmatpush.msra.mxu0 0.0
      %616 = vmatpush.msra.mxu0 0.0
      %v617 = vand.u32 %v212, 4294901760
      %618 = vmatpush.msra.mxu0 %v617
      %v619 = vand.u32 %v211, 4294901760
      %620 = vmatpush.msra.mxu0 %v619
      %v621 = vand.u32 %v210, 4294901760
      %622 = vmatpush.msra.mxu0 %v621
      %v623 = vand.u32 %v209, 4294901760
      %624 = vmatpush.msra.mxu0 %v623
      %v625 = vand.u32 %v208, 4294901760
      %626 = vmatpush.msra.mxu0 %v625
      %v627 = vand.u32 %v207, 4294901760
      %628 = vmatpush.msra.mxu0 %v627
      %v629 = vand.u32 %v206, 4294901760
      %630 = vmatpush.msra.mxu0 %v629
      %v631 = vand.u32 %v205, 4294901760
      %632 = vmatpush.msra.mxu0 %v631
      %v633 = vand.u32 %v219, 4294901760
      %634 = vmatmul.f32.gmra.mxu0 %v633
      %v635 = vpop.f32.mrf.mxu0
      %v636 = vadd.f32 %v583, %v635
      %v637 = vand.u32 %v222, 4294901760
      %638 = vmatmul.f32.gmra.mxu0 %v637
      %v639 = vpop.f32.mrf.mxu0
      %v640 = vadd.f32 %v587, %v639
      %v641 = vand.u32 %v225, 4294901760
      %642 = vmatmul.f32.gmra.mxu0 %v641
      %v643 = vpop.f32.mrf.mxu0
      %v644 = vadd.f32 %v591, %v643
      %v645 = vand.u32 %v228, 4294901760
      %646 = vmatmul.f32.gmra.mxu0 %v645
      %v647 = vpop.f32.mrf.mxu0
      %v648 = vadd.f32 %v595, %v647
      %v649 = vand.u32 %v231, 4294901760
      %650 = vmatmul.f32.gmra.mxu0 %v649
      %v651 = vpop.f32.mrf.mxu0
      %v652 = vadd.f32 %v599, %v651
      %v653 = vand.u32 %v234, 4294901760
      %654 = vmatmul.f32.gmra.mxu0 %v653
      %v655 = vpop.f32.mrf.mxu0
      %v656 = vadd.f32 %v603, %v655
      %v657 = vand.u32 %v237, 4294901760
      %658 = vmatmul.f32.gmra.mxu0 %v657
      %v659 = vpop.f32.mrf.mxu0
      %v660 = vadd.f32 %v607, %v659
      %661 = vdwg.mxu0
      %v662 = vmax.f32 %v636, 0.0
      %v663 = vmax.f32 %v640, 0.0
      %v664 = vmax.f32 %v644, 0.0
      %v665 = vmax.f32 %v648, 0.0
      %v666 = vmax.f32 %v652, 0.0
      %v667 = vmax.f32 %v656, 0.0
      %v668 = vmax.f32 %v660, 0.0
      %v669 = vld [vmem:[%s3] sm:$0xff]
      %v670 = vld [vmem:[%s3 + $0x8] sm:$0xff]
      %v671 = vld [vmem:[%s3 + $0x10] sm:$0xff]
      %v672 = vld [vmem:[%s3 + $0x18] sm:$0xff]
      %v673 = vld [vmem:[%s3 + $0x20] sm:$0xff]
      %v674 = vld [vmem:[%s3 + $0x28] sm:$0xff]
      %v675 = vld [vmem:[%s3 + $0x30] sm:$0x3]
      %vm676 = vcmask 408576
      %v678 = vsel %vm676, %v669, 0
      %v681 = vsel %vm676, %v670, 0
      %v684 = vsel %vm676, %v671, 0
      %v687 = vsel %vm676, %v672, 0
      %v690 = vsel %vm676, %v673, 0
      %v693 = vsel %vm676, %v674, 0
      %v696 = vsel %vm676, %v675, 0
      %vm698 = vcmask 1041408
      %v700 = vsel %vm698, %v668, 0
      %702 = vmatpush.msra.mxu0 0.0
      %703 = vmatpush.msra.mxu0 0.0
      %704 = vmatpush.msra.mxu0 0.0
      %705 = vmatpush.msra.mxu0 0.0
      %706 = vmatpush.msra.mxu0 0.0
      %707 = vmatpush.msra.mxu0 0.0
      %708 = vmatpush.msra.mxu0 0.0
      %709 = vmatpush.msra.mxu0 0.0
      %710 = vmatpush.msra.mxu0 0.0
      %v711 = vand.u32 %v700, 4294901760
      %712 = vmatpush.msra.mxu0 %v711
      %v713 = vand.u32 %v667, 4294901760
      %714 = vmatpush.msra.mxu0 %v713
      %v715 = vand.u32 %v666, 4294901760
      %716 = vmatpush.msra.mxu0 %v715
      %v717 = vand.u32 %v665, 4294901760
      %718 = vmatpush.msra.mxu0 %v717
      %v719 = vand.u32 %v664, 4294901760
      %720 = vmatpush.msra.mxu0 %v719
      %v721 = vand.u32 %v663, 4294901760
      %722 = vmatpush.msra.mxu0 %v721
      %v723 = vand.u32 %v662, 4294901760
      %724 = vmatpush.msra.mxu0 %v723
      %v725 = vand.u32 %v678, 4294901760
      %v726 = vsub.f32 %v678, %v725
      %v727 = vand.u32 %v726, 4294901760
      %v728 = vsub.f32 %v726, %v727
      %v729 = vand.u32 %v728, 4294901760
      %730 = vmatmul.f32.gmra.mxu0 %v729
      %v731 = vpop.f32.mrf.mxu0
      %v732 = vadd.f32 0.0, %v731
      %v733 = vand.u32 %v681, 4294901760
      %v734 = vsub.f32 %v681, %v733
      %v735 = vand.u32 %v734, 4294901760
      %v736 = vsub.f32 %v734, %v735
      %v737 = vand.u32 %v736, 4294901760
      %738 = vmatmul.f32.gmra.mxu0 %v737
      %v739 = vpop.f32.mrf.mxu0
      %v740 = vadd.f32 0.0, %v739
      %v741 = vand.u32 %v684, 4294901760
      %v742 = vsub.f32 %v684, %v741
      %v743 = vand.u32 %v742, 4294901760
      %v744 = vsub.f32 %v742, %v743
      %v745 = vand.u32 %v744, 4294901760
      %746 = vmatmul.f32.gmra.mxu0 %v745
      %v747 = vpop.f32.mrf.mxu0
      %v748 = vadd.f32 0.0, %v747
      %v749 = vand.u32 %v687, 4294901760
      %v750 = vsub.f32 %v687, %v749
      %v751 = vand.u32 %v750, 4294901760
      %v752 = vsub.f32 %v750, %v751
      %v753 = vand.u32 %v752, 4294901760
      %754 = vmatmul.f32.gmra.mxu0 %v753
      %v755 = vpop.f32.mrf.mxu0
      %v756 = vadd.f32 0.0, %v755
      %v757 = vand.u32 %v690, 4294901760
      %v758 = vsub.f32 %v690, %v757
      %v759 = vand.u32 %v758, 4294901760
      %v760 = vsub.f32 %v758, %v759
      %v761 = vand.u32 %v760, 4294901760
      %762 = vmatmul.f32.gmra.mxu0 %v761
      %v763 = vpop.f32.mrf.mxu0
      %v764 = vadd.f32 0.0, %v763
      %v765 = vand.u32 %v693, 4294901760
      %v766 = vsub.f32 %v693, %v765
      %v767 = vand.u32 %v766, 4294901760
      %v768 = vsub.f32 %v766, %v767
      %v769 = vand.u32 %v768, 4294901760
      %770 = vmatmul.f32.gmra.mxu0 %v769
      %v771 = vpop.f32.mrf.mxu0
      %v772 = vadd.f32 0.0, %v771
      %v773 = vand.u32 %v696, 4294901760
      %v774 = vsub.f32 %v696, %v773
      %v775 = vand.u32 %v774, 4294901760
      %v776 = vsub.f32 %v774, %v775
      %v777 = vand.u32 %v776, 4294901760
      %778 = vmatmul.f32.gmra.mxu0 %v777
      %v779 = vpop.f32.mrf.mxu0
      %v780 = vadd.f32 0.0, %v779
      %781 = vdwg.mxu0
      %782 = vmatpush.msra.mxu0 0.0
      %783 = vmatpush.msra.mxu0 0.0
      %784 = vmatpush.msra.mxu0 0.0
      %785 = vmatpush.msra.mxu0 0.0
      %786 = vmatpush.msra.mxu0 0.0
      %787 = vmatpush.msra.mxu0 0.0
      %788 = vmatpush.msra.mxu0 0.0
      %789 = vmatpush.msra.mxu0 0.0
      %790 = vmatpush.msra.mxu0 0.0
      %v791 = vand.u32 %v700, 4294901760
      %v792 = vsub.f32 %v700, %v791
      %v793 = vand.u32 %v792, 4294901760
      %v794 = vsub.f32 %v792, %v793
      %v795 = vand.u32 %v794, 4294901760
      %796 = vmatpush.msra.mxu0 %v795
      %v797 = vand.u32 %v667, 4294901760
      %v798 = vsub.f32 %v667, %v797
      %v799 = vand.u32 %v798, 4294901760
      %v800 = vsub.f32 %v798, %v799
      %v801 = vand.u32 %v800, 4294901760
      %802 = vmatpush.msra.mxu0 %v801
      %v803 = vand.u32 %v666, 4294901760
      %v804 = vsub.f32 %v666, %v803
      %v805 = vand.u32 %v804, 4294901760
      %v806 = vsub.f32 %v804, %v805
      %v807 = vand.u32 %v806, 4294901760
      %808 = vmatpush.msra.mxu0 %v807
      %v809 = vand.u32 %v665, 4294901760
      %v810 = vsub.f32 %v665, %v809
      %v811 = vand.u32 %v810, 4294901760
      %v812 = vsub.f32 %v810, %v811
      %v813 = vand.u32 %v812, 4294901760
      %814 = vmatpush.msra.mxu0 %v813
      %v815 = vand.u32 %v664, 4294901760
      %v816 = vsub.f32 %v664, %v815
      %v817 = vand.u32 %v816, 4294901760
      %v818 = vsub.f32 %v816, %v817
      %v819 = vand.u32 %v818, 4294901760
      %820 = vmatpush.msra.mxu0 %v819
      %v821 = vand.u32 %v663, 4294901760
      %v822 = vsub.f32 %v663, %v821
      %v823 = vand.u32 %v822, 4294901760
      %v824 = vsub.f32 %v822, %v823
      %v825 = vand.u32 %v824, 4294901760
      %826 = vmatpush.msra.mxu0 %v825
      %v827 = vand.u32 %v662, 4294901760
      %v828 = vsub.f32 %v662, %v827
      %v829 = vand.u32 %v828, 4294901760
      %v830 = vsub.f32 %v828, %v829
      %v831 = vand.u32 %v830, 4294901760
      %832 = vmatpush.msra.mxu0 %v831
      %v833 = vand.u32 %v678, 4294901760
      %834 = vmatmul.f32.gmra.mxu0 %v833
      %v835 = vpop.f32.mrf.mxu0
      %v836 = vadd.f32 %v732, %v835
      %v837 = vand.u32 %v681, 4294901760
      %838 = vmatmul.f32.gmra.mxu0 %v837
      %v839 = vpop.f32.mrf.mxu0
      %v840 = vadd.f32 %v740, %v839
      %v841 = vand.u32 %v684, 4294901760
      %842 = vmatmul.f32.gmra.mxu0 %v841
      %v843 = vpop.f32.mrf.mxu0
      %v844 = vadd.f32 %v748, %v843
      %v845 = vand.u32 %v687, 4294901760
      %846 = vmatmul.f32.gmra.mxu0 %v845
      %v847 = vpop.f32.mrf.mxu0
      %v848 = vadd.f32 %v756, %v847
      %v849 = vand.u32 %v690, 4294901760
      %850 = vmatmul.f32.gmra.mxu0 %v849
      %v851 = vpop.f32.mrf.mxu0
      %v852 = vadd.f32 %v764, %v851
      %v853 = vand.u32 %v693, 4294901760
      %854 = vmatmul.f32.gmra.mxu0 %v853
      %v855 = vpop.f32.mrf.mxu0
      %v856 = vadd.f32 %v772, %v855
      %v857 = vand.u32 %v696, 4294901760
      %858 = vmatmul.f32.gmra.mxu0 %v857
      %v859 = vpop.f32.mrf.mxu0
      %v860 = vadd.f32 %v780, %v859
      %861 = vdwg.mxu0
      %862 = vmatpush.msra.mxu0 0.0
      %863 = vmatpush.msra.mxu0 0.0
      %864 = vmatpush.msra.mxu0 0.0
      %865 = vmatpush.msra.mxu0 0.0
      %866 = vmatpush.msra.mxu0 0.0
      %867 = vmatpush.msra.mxu0 0.0
      %868 = vmatpush.msra.mxu0 0.0
      %869 = vmatpush.msra.mxu0 0.0
      %870 = vmatpush.msra.mxu0 0.0
      %v871 = vand.u32 %v700, 4294901760
      %v872 = vsub.f32 %v700, %v871
      %873 = vmatpush.msra.mxu0 %v872
      %v874 = vand.u32 %v667, 4294901760
      %v875 = vsub.f32 %v667, %v874
      %876 = vmatpush.msra.mxu0 %v875
      %v877 = vand.u32 %v666, 4294901760
      %v878 = vsub.f32 %v666, %v877
      %879 = vmatpush.msra.mxu0 %v878
      %v880 = vand.u32 %v665, 4294901760
      %v881 = vsub.f32 %v665, %v880
      %882 = vmatpush.msra.mxu0 %v881
      %v883 = vand.u32 %v664, 4294901760
      %v884 = vsub.f32 %v664, %v883
      %885 = vmatpush.msra.mxu0 %v884
      %v886 = vand.u32 %v663, 4294901760
      %v887 = vsub.f32 %v663, %v886
      %888 = vmatpush.msra.mxu0 %v887
      %v889 = vand.u32 %v662, 4294901760
      %v890 = vsub.f32 %v662, %v889
      %891 = vmatpush.msra.mxu0 %v890
      %v892 = vand.u32 %v678, 4294901760
      %v893 = vsub.f32 %v678, %v892
      %894 = vmatmul.f32.gmra.mxu0 %v893
      %v895 = vpop.f32.mrf.mxu0
      %v896 = vadd.f32 %v836, %v895
      %v897 = vand.u32 %v681, 4294901760
      %v898 = vsub.f32 %v681, %v897
      %899 = vmatmul.f32.gmra.mxu0 %v898
      %v900 = vpop.f32.mrf.mxu0
      %v901 = vadd.f32 %v840, %v900
      %v902 = vand.u32 %v684, 4294901760
      %v903 = vsub.f32 %v684, %v902
      %904 = vmatmul.f32.gmra.mxu0 %v903
      %v905 = vpop.f32.mrf.mxu0
      %v906 = vadd.f32 %v844, %v905
      %v907 = vand.u32 %v687, 4294901760
      %v908 = vsub.f32 %v687, %v907
      %909 = vmatmul.f32.gmra.mxu0 %v908
      %v910 = vpop.f32.mrf.mxu0
      %v911 = vadd.f32 %v848, %v910
      %v912 = vand.u32 %v690, 4294901760
      %v913 = vsub.f32 %v690, %v912
      %914 = vmatmul.f32.gmra.mxu0 %v913
      %v915 = vpop.f32.mrf.mxu0
      %v916 = vadd.f32 %v852, %v915
      %v917 = vand.u32 %v693, 4294901760
      %v918 = vsub.f32 %v693, %v917
      %919 = vmatmul.f32.gmra.mxu0 %v918
      %v920 = vpop.f32.mrf.mxu0
      %v921 = vadd.f32 %v856, %v920
      %v922 = vand.u32 %v696, 4294901760
      %v923 = vsub.f32 %v696, %v922
      %924 = vmatmul.f32.gmra.mxu0 %v923
      %v925 = vpop.f32.mrf.mxu0
      %v926 = vadd.f32 %v860, %v925
      %927 = vdwg.mxu0
      %928 = vmatpush.msra.mxu0 0.0
      %929 = vmatpush.msra.mxu0 0.0
      %930 = vmatpush.msra.mxu0 0.0
      %931 = vmatpush.msra.mxu0 0.0
      %932 = vmatpush.msra.mxu0 0.0
      %933 = vmatpush.msra.mxu0 0.0
      %934 = vmatpush.msra.mxu0 0.0
      %935 = vmatpush.msra.mxu0 0.0
      %936 = vmatpush.msra.mxu0 0.0
      %v937 = vand.u32 %v700, 4294901760
      %938 = vmatpush.msra.mxu0 %v937
      %v939 = vand.u32 %v667, 4294901760
      %940 = vmatpush.msra.mxu0 %v939
      %v941 = vand.u32 %v666, 4294901760
      %942 = vmatpush.msra.mxu0 %v941
      %v943 = vand.u32 %v665, 4294901760
      %944 = vmatpush.msra.mxu0 %v943
      %v945 = vand.u32 %v664, 4294901760
      %946 = vmatpush.msra.mxu0 %v945
      %v947 = vand.u32 %v663, 4294901760
      %948 = vmatpush.msra.mxu0 %v947
      %v949 = vand.u32 %v662, 4294901760
      %950 = vmatpush.msra.mxu0 %v949
      %v951 = vand.u32 %v678, 4294901760
      %v952 = vsub.f32 %v678, %v951
      %v953 = vand.u32 %v952, 4294901760
      %954 = vmatmul.f32.gmra.mxu0 %v953
      %v955 = vpop.f32.mrf.mxu0
      %v956 = vadd.f32 %v896, %v955
      %v957 = vand.u32 %v681, 4294901760
      %v958 = vsub.f32 %v681, %v957
      %v959 = vand.u32 %v958, 4294901760
      %960 = vmatmul.f32.gmra.mxu0 %v959
      %v961 = vpop.f32.mrf.mxu0
      %v962 = vadd.f32 %v901, %v961
      %v963 = vand.u32 %v684, 4294901760
      %v964 = vsub.f32 %v684, %v963
      %v965 = vand.u32 %v964, 4294901760
      %966 = vmatmul.f32.gmra.mxu0 %v965
      %v967 = vpop.f32.mrf.mxu0
      %v968 = vadd.f32 %v906, %v967
      %v969 = vand.u32 %v687, 4294901760
      %v970 = vsub.f32 %v687, %v969
      %v971 = vand.u32 %v970, 4294901760
      %972 = vmatmul.f32.gmra.mxu0 %v971
      %v973 = vpop.f32.mrf.mxu0
      %v974 = vadd.f32 %v911, %v973
      %v975 = vand.u32 %v690, 4294901760
      %v976 = vsub.f32 %v690, %v975
      %v977 = vand.u32 %v976, 4294901760
      %978 = vmatmul.f32.gmra.mxu0 %v977
      %v979 = vpop.f32.mrf.mxu0
      %v980 = vadd.f32 %v916, %v979
      %v981 = vand.u32 %v693, 4294901760
      %v982 = vsub.f32 %v693, %v981
      %v983 = vand.u32 %v982, 4294901760
      %984 = vmatmul.f32.gmra.mxu0 %v983
      %v985 = vpop.f32.mrf.mxu0
      %v986 = vadd.f32 %v921, %v985
      %v987 = vand.u32 %v696, 4294901760
      %v988 = vsub.f32 %v696, %v987
      %v989 = vand.u32 %v988, 4294901760
      %990 = vmatmul.f32.gmra.mxu0 %v989
      %v991 = vpop.f32.mrf.mxu0
      %v992 = vadd.f32 %v926, %v991
      %993 = vdwg.mxu0
      %994 = vmatpush.msra.mxu0 0.0
      %995 = vmatpush.msra.mxu0 0.0
      %996 = vmatpush.msra.mxu0 0.0
      %997 = vmatpush.msra.mxu0 0.0
      %998 = vmatpush.msra.mxu0 0.0
      %999 = vmatpush.msra.mxu0 0.0
      %1000 = vmatpush.msra.mxu0 0.0
      %1001 = vmatpush.msra.mxu0 0.0
      %1002 = vmatpush.msra.mxu0 0.0
      %v1003 = vand.u32 %v700, 4294901760
      %v1004 = vsub.f32 %v700, %v1003
      %v1005 = vand.u32 %v1004, 4294901760
      %1006 = vmatpush.msra.mxu0 %v1005
      %v1007 = vand.u32 %v667, 4294901760
      %v1008 = vsub.f32 %v667, %v1007
      %v1009 = vand.u32 %v1008, 4294901760
      %1010 = vmatpush.msra.mxu0 %v1009
      %v1011 = vand.u32 %v666, 4294901760
      %v1012 = vsub.f32 %v666, %v1011
      %v1013 = vand.u32 %v1012, 4294901760
      %1014 = vmatpush.msra.mxu0 %v1013
      %v1015 = vand.u32 %v665, 4294901760
      %v1016 = vsub.f32 %v665, %v1015
      %v1017 = vand.u32 %v1016, 4294901760
      %1018 = vmatpush.msra.mxu0 %v1017
      %v1019 = vand.u32 %v664, 4294901760
      %v1020 = vsub.f32 %v664, %v1019
      %v1021 = vand.u32 %v1020, 4294901760
      %1022 = vmatpush.msra.mxu0 %v1021
      %v1023 = vand.u32 %v663, 4294901760
      %v1024 = vsub.f32 %v663, %v1023
      %v1025 = vand.u32 %v1024, 4294901760
      %1026 = vmatpush.msra.mxu0 %v1025
      %v1027 = vand.u32 %v662, 4294901760
      %v1028 = vsub.f32 %v662, %v1027
      %v1029 = vand.u32 %v1028, 4294901760
      %1030 = vmatpush.msra.mxu0 %v1029
      %v1031 = vand.u32 %v678, 4294901760
      %1032 = vmatmul.f32.gmra.mxu0 %v1031
      %v1033 = vpop.f32.mrf.mxu0
      %v1034 = vadd.f32 %v956, %v1033
      %v1035 = vand.u32 %v681, 4294901760
      %1036 = vmatmul.f32.gmra.mxu0 %v1035
      %v1037 = vpop.f32.mrf.mxu0
      %v1038 = vadd.f32 %v962, %v1037
      %v1039 = vand.u32 %v684, 4294901760
      %1040 = vmatmul.f32.gmra.mxu0 %v1039
      %v1041 = vpop.f32.mrf.mxu0
      %v1042 = vadd.f32 %v968, %v1041
      %v1043 = vand.u32 %v687, 4294901760
      %1044 = vmatmul.f32.gmra.mxu0 %v1043
      %v1045 = vpop.f32.mrf.mxu0
      %v1046 = vadd.f32 %v974, %v1045
      %v1047 = vand.u32 %v690, 4294901760
      %1048 = vmatmul.f32.gmra.mxu0 %v1047
      %v1049 = vpop.f32.mrf.mxu0
      %v1050 = vadd.f32 %v980, %v1049
      %v1051 = vand.u32 %v693, 4294901760
      %1052 = vmatmul.f32.gmra.mxu0 %v1051
      %v1053 = vpop.f32.mrf.mxu0
      %v1054 = vadd.f32 %v986, %v1053
      %v1055 = vand.u32 %v696, 4294901760
      %1056 = vmatmul.f32.gmra.mxu0 %v1055
      %v1057 = vpop.f32.mrf.mxu0
      %v1058 = vadd.f32 %v992, %v1057
      %1059 = vdwg.mxu0
      %1060 = vmatpush.msra.mxu0 0.0
      %1061 = vmatpush.msra.mxu0 0.0
      %1062 = vmatpush.msra.mxu0 0.0
      %1063 = vmatpush.msra.mxu0 0.0
      %1064 = vmatpush.msra.mxu0 0.0
      %1065 = vmatpush.msra.mxu0 0.0
      %1066 = vmatpush.msra.mxu0 0.0
      %1067 = vmatpush.msra.mxu0 0.0
      %1068 = vmatpush.msra.mxu0 0.0
      %v1069 = vand.u32 %v700, 4294901760
      %1070 = vmatpush.msra.mxu0 %v1069
      %v1071 = vand.u32 %v667, 4294901760
      %1072 = vmatpush.msra.mxu0 %v1071
      %v1073 = vand.u32 %v666, 4294901760
      %1074 = vmatpush.msra.mxu0 %v1073
      %v1075 = vand.u32 %v665, 4294901760
      %1076 = vmatpush.msra.mxu0 %v1075
      %v1077 = vand.u32 %v664, 4294901760
      %1078 = vmatpush.msra.mxu0 %v1077
      %v1079 = vand.u32 %v663, 4294901760
      %1080 = vmatpush.msra.mxu0 %v1079
      %v1081 = vand.u32 %v662, 4294901760
      %1082 = vmatpush.msra.mxu0 %v1081
      %v1083 = vand.u32 %v678, 4294901760
      %1084 = vmatmul.f32.gmra.mxu0 %v1083
      %v1085 = vpop.f32.mrf.mxu0
      %v1086 = vadd.f32 %v1034, %v1085
      %v1087 = vand.u32 %v681, 4294901760
      %1088 = vmatmul.f32.gmra.mxu0 %v1087
      %v1089 = vpop.f32.mrf.mxu0
      %v1090 = vadd.f32 %v1038, %v1089
      %v1091 = vand.u32 %v684, 4294901760
      %1092 = vmatmul.f32.gmra.mxu0 %v1091
      %v1093 = vpop.f32.mrf.mxu0
      %v1094 = vadd.f32 %v1042, %v1093
      %v1095 = vand.u32 %v687, 4294901760
      %1096 = vmatmul.f32.gmra.mxu0 %v1095
      %v1097 = vpop.f32.mrf.mxu0
      %v1098 = vadd.f32 %v1046, %v1097
      %v1099 = vand.u32 %v690, 4294901760
      %1100 = vmatmul.f32.gmra.mxu0 %v1099
      %v1101 = vpop.f32.mrf.mxu0
      %v1102 = vadd.f32 %v1050, %v1101
      %v1103 = vand.u32 %v693, 4294901760
      %1104 = vmatmul.f32.gmra.mxu0 %v1103
      %v1105 = vpop.f32.mrf.mxu0
      %v1106 = vadd.f32 %v1054, %v1105
      %v1107 = vand.u32 %v696, 4294901760
      %1108 = vmatmul.f32.gmra.mxu0 %v1107
      %v1109 = vpop.f32.mrf.mxu0
      %v1110 = vadd.f32 %v1058, %v1109
      %1111 = vdwg.mxu0
      %1112 = vst.msk [vmem:[%s197] sm:$0xff] %vm217, %v1086
      %1113 = vst.msk [vmem:[%s197 + $0x8] sm:$0xff] %vm217, %v1090
      %1114 = vst.msk [vmem:[%s197 + $0x10] sm:$0xff] %vm217, %v1094
      %1115 = vst.msk [vmem:[%s197 + $0x18] sm:$0xff] %vm217, %v1098
      %1116 = vst.msk [vmem:[%s197 + $0x20] sm:$0xff] %vm217, %v1102
      %1117 = vst.msk [vmem:[%s197 + $0x28] sm:$0xff] %vm217, %v1106
      %vm1118 = vcmask 517120
      %1119 = vst.msk [vmem:[%s197 + $0x30] sm:$0x3] %vm1118, %v1110
      %p1120 = scmp.lt.s32.totalorder %s15, 1
      %s1121 = scalar_select %p1120, %s15, 1
      %s1122 = smul.addr %s1121, 7
      %s1123 = smul.addr %s1122, 8
      %s1124 = scalar_lea.vmem %s4, %s1123
      // Predicated region
      $region37: #{gnn_forward.1} parent=35 // pred_check
        %p1125 = pneg %p122
      $region38: #{gnn_forward.1} parent=35 // pred_check_branch
        %1127 = sbr.rel (%p1125) target = $region40
      $region39: #{gnn_forward.1} parent=35 // pred_region
        _
      $region40: #{gnn_forward.1} parent=35 // pred_fallthru
        _
    $region36: #{gnn_forward.1} parent=5 // pred_fallthru
      _
    %p1128 = scmp.le.s32.totalorder 2, %s10
    // Predicated region
    $region41: #{gnn_forward.1} parent=5 // pred_check
      %p1129 = pneg %p1128
    $region42: #{gnn_forward.1} parent=5 // pred_check_branch
      %1131 = sbr.rel (%p1129) target = $region44
    $region43: #{gnn_forward.1} parent=5 // pred_region
      %s1132 = ssub.s32 %s10, 2
      // Predicated region
      $region45: #{gnn_forward.1} parent=43 // pred_check
        %p1133 = pneg %p128
      $region46: #{gnn_forward.1} parent=43 // pred_check_branch
        %1135 = sbr.rel (%p1133) target = $region48
      $region47: #{gnn_forward.1} parent=43 // pred_region
        %p1136 = scmp.lt.s32.totalorder %s16, 1
        %s1137 = scalar_select %p1136, %s16, 1
        %s1138 = smul.addr %s1137, 7
        %s1139 = smul.addr %s1138, 8
        %s1140 = scalar_lea.vmem %s4, %s1139
      $region48: #{gnn_forward.1} parent=43 // pred_fallthru
        _
    $region44: #{gnn_forward.1} parent=5 // pred_fallthru
      _
  $region6: #{gnn_forward.1} parent=0 // loop_footer
    %s14 = sadd.s32 1, %s10
  $region7: #{gnn_forward.1} parent=0 // loop_footer_branch
    %9 = sbr.rel target = $region3
  $region8: #{gnn_forward.1} parent=0 // loop_exit
    _

</llo_original>
